<compile_context>
chip_gen: v5e
topology: v5e:2x2
jax: 0.10.0
libtpu: 0.0.40
codegen_flags: <defaults>
</compile_context>

<pallas_src>
import jax
import jax.numpy as jnp
from jax.experimental import pallas as pl
from jax.experimental.pallas import tpu as pltpu


def _round_up(x, m):
    return ((x + m - 1) // m) * m


def _const_block_spec(shape, single_buffer):
    """BlockSpec for a grid-invariant operand (index_map always (0,...,0)).

    When `single_buffer` is set, request 1-deep buffering so the constant
    weight/bias don't reserve a useless second VMEM buffer.
    """
    index_map = lambda i: (0,) * len(shape)
    if single_buffer:
        try:
            return pl.BlockSpec(shape, index_map, pipeline_mode=pl.Buffered(1))
        except TypeError:  # older BlockSpec signature without pipeline_mode
            pass
    return pl.BlockSpec(shape, index_map)


def _single_input_kernel(x_ref, wt_ref, b_ref, o_ref):
    """out = x @ Wt + b for one (bm, sum_d_pad) batch tile."""
    x = x_ref[...]
    w = wt_ref[...]
    if x.dtype != w.dtype:          # bf16 weight path: cast activations on VPU
        x = x.astype(w.dtype)
    o_ref[...] = (
        jnp.dot(x, w, preferred_element_type=jnp.float32) + b_ref[...]
    ).astype(o_ref.dtype)


def _make_multi_input_kernel(n_keys):
    """Kernel over refs = (x_0, ..., x_{n-1}, wt, b, out). Toy-size path."""

    def kernel(*refs):
        x_refs = refs[:n_keys]
        wt_ref = refs[n_keys]
        b_ref = refs[n_keys + 1]
        o_ref = refs[n_keys + 2]
        if n_keys == 1:
            x = x_refs[0][...]
        else:
            # Concatenate tiny per-key tiles in VMEM (no HBM round-trip).
            x = jnp.concatenate([r[...] for r in x_refs], axis=-1)
        w = wt_ref[...]
        if x.dtype != w.dtype:
            x = x.astype(w.dtype)
        o_ref[...] = (
            jnp.dot(x, w, preferred_element_type=jnp.float32) + b_ref[...]
        ).astype(o_ref.dtype)

    return kernel


def _pick_batch_tile(B, io_row_bytes):
    """Batch tile: multiple of 8 rows, >=2 programs once B >= 256, VMEM-bounded.

    io_row_bytes = f32 bytes per row of the (input + output) slabs.
    """
    if B < 256:
        return B  # single block == full array dims (valid for any B)
    # At least 2 grid programs (engages both v7x TensorCores via "parallel"
    # semantics), rows a multiple of 8 (f32 sublane), at most 1024 rows/step.
    bm = min(1024, _round_up(pl.cdiv(B, 2), 8))
    # Keep double-buffered (input + output) blocks within ~24 MiB of VMEM.
    budget = 24 << 20
    max_rows = max(8, (budget // (2 * io_row_bytes)) // 8 * 8)
    return min(bm, max_rows)


class ActionProcessorPallas:
    """JAX/Pallas port of pyforce.nn.action.ActionProcessor.

    `space_dims` maps action-space key -> last-dim size of that sub-space
    (nn.Linear(d_k, d_k) in the original). Parameters are initialized with
    PyTorch's default Linear init.
    """

    def __init__(self, space_dims, key):
        self.space_dims = dict(space_dims)
        self.keys = tuple(sorted(self.space_dims))
        dims = [self.space_dims[k] for k in self.keys]
        n_keys = len(self.keys)
        sum_d = int(sum(dims))
        self.sum_d = sum_d

        # Lane-dense padding of the fused width, only when it is sizable and
        # not already a multiple of 128 (avoids masked partial stores).
        sum_d_pad = _round_up(sum_d, 128) if sum_d >= 128 else sum_d
        self.sum_d_pad = sum_d_pad

        # bf16 weights for large fused matmuls; exact f32 at small sizes.
        wt_dtype = jnp.bfloat16 if sum_d_pad >= 256 else jnp.float32

        # Per-key params (PyTorch layout, kept for reference checking) and
        # fused block-diagonal W^T + bias row, built once at init.
        # TODO(synk): for action spaces with many keys, group keys into
        # ~128-wide lane-aligned groups instead of one O(sum_d^2) block-diag.
        self.params = {}
        wt_fused = jnp.zeros((sum_d_pad, sum_d_pad), jnp.float32)
        b_fused = jnp.zeros((sum_d_pad,), jnp.float32)
        off = 0
        for k, d in zip(self.keys, dims):
            key, kw, kb = jax.random.split(key, 3)
            bound = 1.0 / float(d) ** 0.5
            w = jax.random.uniform(kw, (d, d), jnp.float32, -bound, bound)
            b = jax.random.uniform(kb, (d,), jnp.float32, -bound, bound)
            self.params[k] = (w, b)
            wt_fused = wt_fused.at[off:off + d, off:off + d].set(w.T)
            b_fused = b_fused.at[off:off + d].set(b)
            off += d
        self.wt_fused = wt_fused.astype(wt_dtype)        # (sum_d_pad, sum_d_pad)
        self.b_fused = b_fused.reshape(1, sum_d_pad)     # (1, sum_d_pad), f32

        keys = self.keys
        kdims = tuple(dims)
        wt_itemsize = jnp.dtype(wt_dtype).itemsize
        multi_kernel = _make_multi_input_kernel(n_keys)
        single_buffer_consts = sum_d_pad >= 512  # only matters for big weights

        def fwd(x, wt_arr, b2):
            xs = [x[k] for k in keys]
            B = xs[0].shape[0]
            bm = _pick_batch_tile(B, 2 * sum_d_pad * 4)
            grid = (pl.cdiv(B, bm),)

            wt_spec = _const_block_spec((sum_d_pad, sum_d_pad),
                                        single_buffer_consts)
            b_spec = _const_block_spec((1, sum_d_pad), single_buffer_consts)

            # Scoped VMEM: double-buffered IO blocks + (conservatively
            # double-counted) constants + headroom; never above 64 MiB so it
            # stays within v7x physical VMEM.
            io_bytes = 2 * (2 * bm * sum_d_pad * 4)
            const_bytes = 2 * (sum_d_pad * sum_d_pad * wt_itemsize
                               + sum_d_pad * 4)
            vmem_limit = int(min(max(io_bytes + const_bytes + (4 << 20),
                                     16 << 20), 64 << 20))
            cparams = pltpu.CompilerParams(
                dimension_semantics=("parallel",),
                vmem_limit_bytes=vmem_limit,
            )

            use_single = (n_keys == 1 or sum_d_pad != sum_d
                          or sum_d >= 128 or B >= 256)
            if use_single:
                # Lane-dense single-slab input built once in the jitted wrapper.
                xcat = xs[0] if n_keys == 1 else jnp.concatenate(xs, axis=-1)
                if sum_d_pad != sum_d:
                    xcat = jnp.pad(xcat, ((0, 0), (0, sum_d_pad - sum_d)))
                out = pl.pallas_call(
                    _single_input_kernel,
                    out_shape=jax.ShapeDtypeStruct((B, sum_d_pad), jnp.float32),
                    grid=grid,
                    in_specs=[pl.BlockSpec((bm, sum_d_pad), lambda i: (i, 0)),
                              wt_spec, b_spec],
                    out_specs=pl.BlockSpec((bm, sum_d_pad), lambda i: (i, 0)),
                    compiler_params=cparams,
                )(xcat, wt_arr, b2)
            else:
                # Toy regime: pass the narrow per-key tensors directly and
                # concatenate in VMEM (skips the wrapper materialization).
                out = pl.pallas_call(
                    multi_kernel,
                    out_shape=jax.ShapeDtypeStruct((B, sum_d_pad), jnp.float32),
                    grid=grid,
                    in_specs=[pl.BlockSpec((bm, d), lambda i: (i, 0))
                              for d in kdims] + [wt_spec, b_spec],
                    out_specs=pl.BlockSpec((bm, sum_d_pad), lambda i: (i, 0)),
                    compiler_params=cparams,
                )(*xs, wt_arr, b2)

            if sum_d_pad != sum_d:
                out = out[:, :sum_d]
            return out

        # jit the whole forward once (single dispatch; no per-key launches).
        self._fwd = jax.jit(fwd)

    def __call__(self, x):
        return self._fwd(x, self.wt_fused, self.b_fused)


def _reference(x, params):
    """Pure-JAX reference mirroring the PyTorch forward."""
    keys = sorted(x)
    outs = []
    for k in keys:
        w, b = params[k]
        outs.append(x[k] @ w.T + b)
    return jnp.concatenate(outs, axis=-1)


if __name__ == "__main__":
    root = jax.random.PRNGKey(0)
    k_params, k_move, k_turn = jax.random.split(root, 3)

    # Synthetic dict action space: two continuous sub-spaces.
    space_dims = {"move": 8, "turn": 4}
    proc = ActionProcessorPallas(space_dims, k_params)
    sum_d = sum(space_dims.values())

    # 1) Toy batch: per-key fused path, single grid step.
    batch = 2
    x = {
        "move": jax.random.normal(k_move, (batch, space_dims["move"]), jnp.float32),
        "turn": jax.random.normal(k_turn, (batch, space_dims["turn"]), jnp.float32),
    }
    out = jax.block_until_ready(proc(x))
    ref = _reference(x, proc.params)
    assert out.shape == (batch, sum_d), out.shape
    assert jnp.allclose(out, ref, atol=1e-5, rtol=1e-5), "mismatch vs reference"

    # 2) Larger, non-divisible batch: exercises the cdiv grid (2 parallel
    #    programs, ragged last block) and the wrapper-concat single-slab path.
    k_m2, k_t2 = jax.random.split(jax.random.PRNGKey(1))
    batch2 = 260
    x2 = {
        "move": jax.random.normal(k_m2, (batch2, space_dims["move"]), jnp.float32),
        "turn": jax.random.normal(k_t2, (batch2, space_dims["turn"]), jnp.float32),
    }
    out2 = jax.block_until_ready(proc(x2))
    ref2 = _reference(x2, proc.params)
    assert out2.shape == (batch2, sum_d), out2.shape
    assert jnp.allclose(out2, ref2, atol=1e-5, rtol=1e-5), "mismatch vs reference (large B)"

    print("KERNEL_OK")
</pallas_src>

<mosaic_0001>
module attributes {stable_mosaic.version = 11 : i64} {
  func.func @kernel(%arg0: i32, %arg1: memref<2x8xf32, #tpu.memory_space<vmem>>, %arg2: memref<2x4xf32, #tpu.memory_space<vmem>>, %arg3: memref<12x12xf32, #tpu.memory_space<vmem>>, %arg4: memref<1x12xf32, #tpu.memory_space<vmem>>, %arg5: memref<2x12xf32, #tpu.memory_space<vmem>>) attributes {dimension_semantics = [#tpu.dimension_semantics<parallel>], iteration_bounds = array<i64: 1>, scalar_prefetch = 0 : i64, scratch_operands = 0 : i64, tpu.core_type = #tpu.core_type<tc>, window_params = [{transform_indices = @transform_0, window_bounds = array<i64: 2, 8>}, {transform_indices = @transform_1, window_bounds = array<i64: 2, 4>}, {pipeline_mode = #tpu.pipeline_mode<synchronous>, transform_indices = @transform_2, window_bounds = array<i64: 12, 12>}, {pipeline_mode = #tpu.pipeline_mode<synchronous>, transform_indices = @transform_3, window_bounds = array<i64: 1, 12>}, {transform_indices = @transform_4, window_bounds = array<i64: 2, 12>}]} {
    %c0 = arith.constant 0 : index
    %c0_0 = arith.constant 0 : index
    %0 = vector.load %arg1[%c0, %c0_0] : memref<2x8xf32, #tpu.memory_space<vmem>>, vector<2x8xf32>
    %c0_1 = arith.constant 0 : index
    %c0_2 = arith.constant 0 : index
    %1 = vector.load %arg2[%c0_1, %c0_2] : memref<2x4xf32, #tpu.memory_space<vmem>>, vector<2x4xf32>
    %2 = tpu.concatenate %0, %1 in 1 : vector<2x8xf32>, vector<2x4xf32> -> vector<2x12xf32>
    %c0_3 = arith.constant 0 : index
    %c0_4 = arith.constant 0 : index
    %3 = vector.load %arg3[%c0_3, %c0_4] : memref<12x12xf32, #tpu.memory_space<vmem>>, vector<12x12xf32>
    %cst = arith.constant dense<0.000000e+00> : vector<2x12xf32>
    %4 = tpu.matmul %2, %3, %cst {dimension_numbers = #tpu.dot_dimension_numbers<[1], [0], [0], [1], [0, 0, 1, 1], [], []>} : vector<2x12xf32>, vector<12x12xf32>, vector<2x12xf32> -> vector<2x12xf32>
    %c0_5 = arith.constant 0 : index
    %c0_6 = arith.constant 0 : index
    %5 = vector.load %arg4[%c0_5, %c0_6] : memref<1x12xf32, #tpu.memory_space<vmem>>, vector<1x12xf32>
    %6 = vector.broadcast %5 : vector<1x12xf32> to vector<2x12xf32>
    %7 = arith.addf %4, %6 : vector<2x12xf32>
    %c0_7 = arith.constant 0 : index
    %c0_8 = arith.constant 0 : index
    %8 = vector.load %arg5[%c0_7, %c0_8] : memref<2x12xf32, #tpu.memory_space<vmem>>, vector<2x12xf32>
    tpu.vector_store %arg5[%c0_7, %c0_8], %7 {strides = array<i32>} : memref<2x12xf32, #tpu.memory_space<vmem>>, vector<2x12xf32>,
    return
  }
  func.func @transform_0(%arg0: i32) -> (i32, i32) {
    %c0_i32 = arith.constant 0 : i32
    %c0_i32_0 = arith.constant 0 : i32
    return %arg0, %c0_i32 : i32, i32
  }
  func.func @transform_1(%arg0: i32) -> (i32, i32) {
    %c0_i32 = arith.constant 0 : i32
    %c0_i32_0 = arith.constant 0 : i32
    return %arg0, %c0_i32 : i32, i32
  }
  func.func @transform_2(%arg0: i32) -> (i32, i32) {
    %c0_i32 = arith.constant 0 : i32
    %c0_i32_0 = arith.constant 0 : i32
    %c0_i32_1 = arith.constant 0 : i32
    return %c0_i32, %c0_i32_0 : i32, i32
  }
  func.func @transform_3(%arg0: i32) -> (i32, i32) {
    %c0_i32 = arith.constant 0 : i32
    %c0_i32_0 = arith.constant 0 : i32
    %c0_i32_1 = arith.constant 0 : i32
    return %c0_i32, %c0_i32_0 : i32, i32
  }
  func.func @transform_4(%arg0: i32) -> (i32, i32) {
    %c0_i32 = arith.constant 0 : i32
    %c0_i32_0 = arith.constant 0 : i32
    return %arg0, %c0_i32 : i32, i32
  }
}

</mosaic_0001>

<llo_original>
// kernel: fwd.1
$region0: #{fwd.1}
  #allocation0 [shape = 'u32[]', space=smem, size = 0x4, offset = 0x4, fixed_abs, tag = 'smem constant byte address 0x4 - core index']
  #allocation1 [shape = 'u32[72,128]{1,0:T(1,128)}', space=vmem, size = 0x9000, scoped, tag = 'internal scratch']
  %s0 = inlined_call_operand.hbm [shape: f32[2,8], index: 0, kind: input, shape index: {}]
  %s1 = inlined_call_operand.hbm [shape: f32[2,4], index: 1, kind: input, shape index: {}]
  %s2 = inlined_call_operand.hbm [shape: f32[12,12], index: 2, kind: input, shape index: {}]
  %s3 = inlined_call_operand.vmem [shape: f32[1,12], index: 3, kind: input, shape index: {}]
  %s4 = inlined_call_operand.hbm [shape: f32[2,12], index: 4, kind: output, shape index: {}]
  %s5 = sld [smem:[#allocation0]]
  $region38: #{fwd.1} parent=0
    _
  %s7 = ssub.s32 1, %s5
  %s8 = scalar_select 0, %s7, %s5
  $region1: #{fwd.1} parent=0
    #allocation2 [shape = 'u8[1024]{0}', space=vmem, size = 0x400, scoped, tag = 'input window, operand 0, single buffered']
    #allocation3 [shape = 's32[1]{0}', space=sflag, size = 0x4, scoped, tag = 'scoped memory for fwd.1']
    #allocation4 [shape = 's32[1]{0}', space=sflag, size = 0x4, scoped, tag = 'scoped memory for fwd.1']
    #allocation5 [shape = 'u8[1024]{0}', space=vmem, size = 0x400, scoped, tag = 'input window, operand 1, single buffered']
    #allocation6 [shape = 's32[1]{0}', space=sflag, size = 0x4, scoped, tag = 'scoped memory for fwd.1']
    #allocation7 [shape = 'u8[8192]{0}', space=vmem, size = 0x2000, scoped, tag = 'input window, operand 2, single buffered']
    #allocation8 [shape = 'u8[1024]{0}', space=vmem, size = 0x400, scoped, tag = 'output window, operand 0, single buffered']
    %9 = vsyncpa [#allocation3], 0
    %10 = vsyncpa [#allocation6], 0
    %11 = vsyncpa [#allocation4], 0
    // Predicated region
    $region2: #{fwd.1} parent=1 // pred_check
      _
    $region3: #{fwd.1} parent=1 // pred_check_branch
      %13 = sbr.rel (0) target = $region5
    $region4: #{fwd.1} parent=1 // pred_region
      %15 = vsyncadd [#allocation3], 0
      %s17 = sshll.u32 %s0, 4
      %s18 = int_to_ptr.hbm [resolvable:$true] %s17
      %s19 = sshll.u32 [#allocation2], 4
      %s20 = int_to_ptr.vmem [resolvable:$true] %s19
      %22 = dma.hbm_to_vmem [thread:$0]  %s18, 32, %s20, [#allocation3]
    $region5: #{fwd.1} parent=1 // pred_fallthru
      _
    // Predicated region
    $region6: #{fwd.1} parent=1 // pred_check
      _
    $region7: #{fwd.1} parent=1 // pred_check_branch
      %24 = sbr.rel (0) target = $region9
    $region8: #{fwd.1} parent=1 // pred_region
      %26 = vsyncadd [#allocation6], 0
      %s28 = sshll.u32 %s1, 4
      %s29 = int_to_ptr.hbm [resolvable:$true] %s28
      %s30 = sshll.u32 [#allocation5], 4
      %s31 = int_to_ptr.vmem [resolvable:$true] %s30
      %33 = dma.hbm_to_vmem [thread:$0]  %s29, 32, %s31, [#allocation6]
    $region9: #{fwd.1} parent=1 // pred_fallthru
      _
    // Predicated region
    $region10: #{fwd.1} parent=1 // pred_check
      _
    $region11: #{fwd.1} parent=1 // pred_check_branch
      %35 = sbr.rel (0) target = $region13
    $region12: #{fwd.1} parent=1 // pred_region
      %37 = vsyncadd [#allocation6], 0
      %s38 = sshll.u32 %s2, 4
      %s39 = int_to_ptr.hbm [resolvable:$true] %s38
      %s40 = sshll.u32 [#allocation7], 4
      %s41 = int_to_ptr.vmem [resolvable:$true] %s40
      %46 = dma.hbm_to_vmem [thread:$0]  %s39, 256, %s41, [#allocation6], 128, 128, 8
    $region13: #{fwd.1} parent=1 // pred_fallthru
      _
    // Predicated region
    $region14: #{fwd.1} parent=1 // pred_check
      _
    $region15: #{fwd.1} parent=1 // pred_check_branch
      %48 = sbr.rel (0) target = $region17
    $region16: #{fwd.1} parent=1 // pred_region
      _
    $region17: #{fwd.1} parent=1 // pred_fallthru
      _
    // Predicated region
    $region18: #{fwd.1} parent=1 // pred_check
      _
    $region19: #{fwd.1} parent=1 // pred_check_branch
      %50 = sbr.rel (0) target = $region21
    $region20: #{fwd.1} parent=1 // pred_region
      %52 = dma.done [#allocation3], 32
    $region21: #{fwd.1} parent=1 // pred_fallthru
      _
    // Predicated region
    $region22: #{fwd.1} parent=1 // pred_check
      _
    $region23: #{fwd.1} parent=1 // pred_check_branch
      %54 = sbr.rel (0) target = $region25
    $region24: #{fwd.1} parent=1 // pred_region
      %56 = dma.done [#allocation6], 32
    $region25: #{fwd.1} parent=1 // pred_fallthru
      _
    // Predicated region
    $region26: #{fwd.1} parent=1 // pred_check
      _
    $region27: #{fwd.1} parent=1 // pred_check_branch
      %58 = sbr.rel (0) target = $region29
    $region28: #{fwd.1} parent=1 // pred_region
      %60 = dma.done [#allocation6], 256
    $region29: #{fwd.1} parent=1 // pred_fallthru
      _
    %v61 = vld [vmem:[#allocation2] sm:$0x3]
    %v62 = vld [vmem:[#allocation5] sm:$0x3]
    %64 = vrot.lane.b32.xlu0 %v62, 8
    %v65 = vpop.permute.xlu0 %64
    %vm67 = vcmask 64512
    %v68 = vsel %vm67, %v61, %v65
    %v69 = vld [vmem:[#allocation7] sm:$0xff]
    %v70 = vld [vmem:[#allocation7 + $0x8] sm:$0xf]
    %v71 = vld [vmem:[%s3] sm:$0x1]
    %v73 = vperm.slane %v71, 0
    %vm75 = vcmask 97280
    %v77 = vsel %vm75, %v68, 0
    %vm79 = vcmask 1043456
    %v81 = vsel %vm79, %v70, 0
    %83 = vmatpush.msra.mxu0 0.0
    %84 = vmatpush.msra.mxu0 0.0
    %85 = vmatpush.msra.mxu0 0.0
    %86 = vmatpush.msra.mxu0 0.0
    %87 = vmatpush.msra.mxu0 0.0
    %88 = vmatpush.msra.mxu0 0.0
    %89 = vmatpush.msra.mxu0 0.0
    %90 = vmatpush.msra.mxu0 0.0
    %91 = vmatpush.msra.mxu0 0.0
    %92 = vmatpush.msra.mxu0 0.0
    %93 = vmatpush.msra.mxu0 0.0
    %94 = vmatpush.msra.mxu0 0.0
    %95 = vmatpush.msra.mxu0 0.0
    %96 = vmatpush.msra.mxu0 0.0
    %97 = vmatpush.msra.mxu0 %v81
    %98 = vmatpush.msra.mxu0 %v69
    %99 = vmatmul.f32.gmra.mxu0 %v77
    %v100 = vpop.f32.mrf.mxu0
    %v101 = vadd.f32 %v73, %v100
    %102 = vdwg.mxu0
    %vm103 = vcmask 91136
    %104 = vst.msk [vmem:[#allocation8] sm:$0x3] %vm103, %v101
    // Predicated region
    $region30: #{fwd.1} parent=1 // pred_check
      _
    $region31: #{fwd.1} parent=1 // pred_check_branch
      %106 = sbr.rel (0) target = $region33
    $region32: #{fwd.1} parent=1 // pred_region
      %108 = vsyncadd [#allocation4], 0
      %s110 = sshll.u32 [#allocation8], 4
      %s111 = int_to_ptr.vmem [resolvable:$true] %s110
      %s112 = sshll.u32 %s4, 4
      %s113 = int_to_ptr.hbm [resolvable:$true] %s112
      %115 = dma.vmem_to_hbm [thread:$0]  %s111, 32, %s113, [#allocation4]
    $region33: #{fwd.1} parent=1 // pred_fallthru
      _
    // Predicated region
    $region34: #{fwd.1} parent=1 // pred_check
      _
    $region35: #{fwd.1} parent=1 // pred_check_branch
      %117 = sbr.rel (0) target = $region37
    $region36: #{fwd.1} parent=1 // pred_region
      %119 = dma.done [#allocation4], 32
    $region37: #{fwd.1} parent=1 // pred_fallthru
      _
    %120 = vsyncpa [#allocation3], 1
    %121 = vsyncpa [#allocation6], 1
    %122 = vsyncpa [#allocation4], 1

</llo_original>
